<compile_context>
chip_gen: v7x
topology: tpu7x:2x2x1
jax: 0.10.0
libtpu: 0.0.40
codegen_flags: <defaults>
</compile_context>

<pallas_src>
import jax
import jax.numpy as jnp
from jax.experimental import pallas as pl
from jax.experimental.pallas import tpu as pltpu


# -----------------------------------------------------------------------------
# 1-D interpolation matrices (match torch.nn.functional.interpolate,
# mode='bilinear', align_corners=False).
# -----------------------------------------------------------------------------
def _interp_matrix(out_size: int, in_size: int, dtype) -> jnp.ndarray:
    """Dense (out_size, in_size) linear-interpolation matrix.

    src = (dst + 0.5) * (in/out) - 0.5, clamped to >= 0; gather indices clamped
    to in_size - 1 (x0 == x1 at the right edge merges the two taps).
    """
    scale = in_size / out_size
    dst = jnp.arange(out_size, dtype=jnp.float32)
    src = jnp.maximum((dst + 0.5) * scale - 0.5, 0.0)
    x0 = jnp.minimum(jnp.floor(src).astype(jnp.int32), in_size - 1)
    x1 = jnp.minimum(x0 + 1, in_size - 1)
    lam = src - x0.astype(jnp.float32)
    rows = jnp.arange(out_size)
    w = jnp.zeros((out_size, in_size), jnp.float32)
    w = w.at[rows, x0].add(1.0 - lam)
    w = w.at[rows, x1].add(lam)
    return w.astype(dtype)


# -----------------------------------------------------------------------------
# Kernel
# -----------------------------------------------------------------------------
def _make_kernel(tc: int, h_in: int, w_out: int, cdt):
    """Kernel closure over static tile params (tc planes per grid step)."""

    def kernel(wh_ref, wwt_ref, x_ref, o_ref):
        # wh_ref : (H_out, H_in)          compute dtype (f32 or bf16)
        # wwt_ref: (W_in,  W_out)         compute dtype
        # x_ref  : (1, tc*H_in, W_in)     input dtype
        # o_ref  : (tc, H_out, W_out)     output dtype (un-interleaved planes)
        x = x_ref[0].astype(cdt)                                  # (tc*H_in, W_in)

        # Width pass: single wide-M GEMM over all tc planes.
        tmp = jnp.dot(x, wwt_ref[...],
                      preferred_element_type=jnp.float32)         # (tc*H_in, W_out)
        tmp = tmp.astype(cdt)

        # Interleave planes along the lane dim: (H_in, tc*W_out).  Static
        # sublane slices + lane concat (XLU slot; MXU stays busy).
        tmp_i = jnp.concatenate(
            [tmp[t * h_in:(t + 1) * h_in, :] for t in range(tc)], axis=-1)

        # Height pass: single lane-dense GEMM (N = tc*W_out, picked >= 128).
        out = jnp.dot(wh_ref[...], tmp_i,
                      preferred_element_type=jnp.float32)         # (H_out, tc*W_out)
        out = out.astype(o_ref.dtype)

        # De-interleave AT THE STORE: each plane goes to its own output slot,
        # so the wrapper never has to transpose (no extra HBM pass).  Masked
        # stores when W_out < 128 are far cheaper than that extra pass.
        for t in range(tc):
            o_ref[t] = out[:, t * w_out:(t + 1) * w_out]

    return kernel


# -----------------------------------------------------------------------------
# VMEM accounting + tile (tc) selection
# -----------------------------------------------------------------------------
def _round_up(x: int, m: int) -> int:
    return ((x + m - 1) // m) * m


def _pad2d_bytes(rows: int, cols: int, itemsize: int, lead: int = 1) -> int:
    """Bytes for a (lead, rows, cols) VMEM buffer with TPU tile padding."""
    sublane = (8 * 4) // itemsize            # 8 for f32, 16 for bf16
    return lead * _round_up(rows, sublane) * _round_up(cols, 128) * itemsize


def _working_set_bytes(t, h_in, w_in, h_out, w_out, in_is, out_is, c_is) -> int:
    ws = 0
    # Pipeline blocks are double-buffered by Pallas.
    ws += 2 * _pad2d_bytes(t * h_in, w_in, in_is)            # x block
    ws += 2 * _pad2d_bytes(h_out, w_out, out_is, lead=t)     # out block
    ws += 2 * _pad2d_bytes(h_out, h_in, c_is)                # Wh (constant)
    ws += 2 * _pad2d_bytes(w_in, w_out, c_is)                # Ww^T (constant)
    # In-kernel intermediates (conservatively assume all live at once).
    ws += _pad2d_bytes(t * h_in, w_in, c_is)                 # x cast
    ws += _pad2d_bytes(t * h_in, w_out, 4)                   # width-pass f32 acc
    ws += _pad2d_bytes(t * h_in, w_out, c_is)                # downcast copy
    ws += _pad2d_bytes(h_in, t * w_out, c_is)                # interleaved operand
    ws += _pad2d_bytes(h_out, t * w_out, 4)                  # height-pass f32 acc
    ws += _pad2d_bytes(h_out, t * w_out, out_is)             # output cast
    return ws


def _vmem_capacity_bytes() -> int:
    try:
        return int(pltpu.get_tpu_info().vmem_capacity_bytes)
    except Exception:
        return 64 * 1024 * 1024  # conservative fallback (v7x-sized)


def _pick_tc(nc, h_in, w_in, h_out, w_out, in_is, out_is, c_is, budget) -> int:
    """Planes per grid step.

    Among divisors of nc whose padded, double-buffered working set fits the
    budget, prefer (a) lane-dense height GEMM (tc*W_out a multiple of 128),
    then (b) an even grid length (even split across v7x's two TensorCores;
    harmless on 1-TC chips), then the largest tc (fewer grid steps, bigger
    DMAs).  tc is capped at 64 to bound in-kernel unrolling.
    """
    fits = [t for t in range(1, min(nc, 64) + 1)
            if nc % t == 0
            and _working_set_bytes(t, h_in, w_in, h_out, w_out,
                                   in_is, out_is, c_is) <= budget]
    if not fits:
        return 1
    lane_ok = [t for t in fits if (t * w_out) % 128 == 0]
    pool = lane_ok if lane_ok else fits
    even_g = [t for t in pool if (nc // t) % 2 == 0]
    pool = even_g if even_g else pool
    return max(pool)


# -----------------------------------------------------------------------------
# Public wrapper
# -----------------------------------------------------------------------------
def interpolate_bilinear(x: jnp.ndarray, size) -> jnp.ndarray:
    """Pallas equivalent of Interpolate(size, mode='bilinear')(x) for NCHW x."""
    n, c, h_in, w_in = x.shape
    h_out, w_out = size
    nc = n * c

    # Compute dtype: keep bf16 on the MXU (f32 accumulate), f32 otherwise.
    cdt = jnp.bfloat16 if x.dtype == jnp.bfloat16 else jnp.float32
    c_is = jnp.dtype(cdt).itemsize
    in_is = x.dtype.itemsize
    out_is = in_is

    wh = _interp_matrix(h_out, h_in, cdt)                          # (H_out, H_in)
    wwt = _interp_matrix(w_out, w_in, jnp.float32).T.astype(cdt)   # (W_in, W_out)

    # Generation-aware VMEM budget (~1/3 of physical for the working set) and
    # an explicit scoped-VMEM limit (v5e default 16 MiB, v7x default 32 MiB).
    cap = _vmem_capacity_bytes()
    budget = max(cap // 3, 8 * 1024 * 1024)
    vmem_limit = int(min(max(cap * 3 // 4, 32 * 1024 * 1024), 128 * 1024 * 1024))

    tc = _pick_tc(nc, h_in, w_in, h_out, w_out, in_is, out_is, c_is, budget)
    g = nc // tc

    # Free, row-major reshape: group tc planes (stacked along rows) per step.
    x_g = x.reshape(g, tc * h_in, w_in)

    flops = 2 * nc * w_out * h_in * (w_in + h_out)
    bytes_accessed = (x.size * in_is
                      + nc * h_out * w_out * out_is
                      + g * (wh.size + wwt.size) * c_is)

    # NOTE: the constant weight blocks are tiny at these shapes, so we keep the
    # default double-buffering for them (counted in the VMEM budget above)
    # rather than risking single-buffer pipeline_mode.
    out_flat = pl.pallas_call(
        _make_kernel(tc, h_in, w_out, cdt),
        out_shape=jax.ShapeDtypeStruct((nc, h_out, w_out), x.dtype),
        grid_spec=pltpu.PrefetchScalarGridSpec(
            num_scalar_prefetch=0,
            grid=(g,),
            in_specs=[
                pl.BlockSpec((h_out, h_in), lambda i: (0, 0)),        # Wh (constant)
                pl.BlockSpec((w_in, w_out), lambda i: (0, 0)),        # Ww^T (constant)
                pl.BlockSpec((1, tc * h_in, w_in), lambda i: (i, 0, 0)),
            ],
            out_specs=pl.BlockSpec((tc, h_out, w_out), lambda i: (i, 0, 0)),
        ),
        compiler_params=pltpu.CompilerParams(
            dimension_semantics=("parallel",),
            vmem_limit_bytes=vmem_limit),
        cost_estimate=pl.CostEstimate(
            flops=int(flops), transcendentals=0,
            bytes_accessed=int(bytes_accessed)),
    )(wh, wwt, x_g)

    # Planes are already un-interleaved: free row-major reshape only.
    return out_flat.reshape(n, c, h_out, w_out)


if __name__ == "__main__":
    key = jax.random.PRNGKey(0)
    # Small shapes consistent with the module's forward: NCHW input, 2x upsample.
    x = jax.random.normal(key, (2, 4, 16, 16), dtype=jnp.float32)
    size = (32, 32)

    out = interpolate_bilinear(x, size)
    out = jax.block_until_ready(out)

    assert out.shape == (2, 4, 32, 32), out.shape
    assert bool(jnp.all(jnp.isfinite(out)))

    # Pure-JAX reference using the same interpolation matrices.
    wh_ref = _interp_matrix(size[0], x.shape[2], jnp.float32)
    ww_ref = _interp_matrix(size[1], x.shape[3], jnp.float32)
    ref = jnp.einsum('oh,nchw,pw->ncop', wh_ref, x, ww_ref)
    max_err = float(jnp.max(jnp.abs(out - ref)))
    assert max_err < 1e-1, max_err

    print("KERNEL_OK")
</pallas_src>

<mosaic_0001>
module attributes {stable_mosaic.version = 11 : i64} {
  func.func @kernel(%arg0: i32, %arg1: memref<32x16xf32, #tpu.memory_space<vmem>>, %arg2: memref<16x32xf32, #tpu.memory_space<vmem>>, %arg3: memref<1x64x16xf32, #tpu.memory_space<vmem>>, %arg4: memref<4x32x32xf32, #tpu.memory_space<vmem>>) attributes {dimension_semantics = [#tpu.dimension_semantics<parallel>], iteration_bounds = array<i64: 2>, scalar_prefetch = 0 : i64, scratch_operands = 0 : i64, tpu.core_type = #tpu.core_type<tc>, window_params = [{pipeline_mode = #tpu.pipeline_mode<synchronous>, transform_indices = @transform_0, window_bounds = array<i64: 32, 16>}, {pipeline_mode = #tpu.pipeline_mode<synchronous>, transform_indices = @transform_1, window_bounds = array<i64: 16, 32>}, {transform_indices = @transform_2, window_bounds = array<i64: 1, 64, 16>}, {transform_indices = @transform_3, window_bounds = array<i64: 4, 32, 32>}]} {
    %c0 = arith.constant 0 : index
    %c0_0 = arith.constant 0 : index
    %c0_1 = arith.constant 0 : index
    %0 = vector.load %arg3[%c0, %c0_0, %c0_1] : memref<1x64x16xf32, #tpu.memory_space<vmem>>, vector<1x64x16xf32>
    %1 = vector.shape_cast %0 : vector<1x64x16xf32> to vector<64x16xf32>
    %c0_2 = arith.constant 0 : index
    %c0_3 = arith.constant 0 : index
    %2 = vector.load %arg2[%c0_2, %c0_3] : memref<16x32xf32, #tpu.memory_space<vmem>>, vector<16x32xf32>
    %cst = arith.constant dense<0.000000e+00> : vector<64x32xf32>
    %3 = tpu.matmul %1, %2, %cst {dimension_numbers = #tpu.dot_dimension_numbers<[1], [0], [0], [1], [0, 0, 1, 1], [], []>} : vector<64x16xf32>, vector<16x32xf32>, vector<64x32xf32> -> vector<64x32xf32>
    %4 = vector.extract_strided_slice %3 {offsets = [0, 0], sizes = [16, 32], strides = [1, 1]} : vector<64x32xf32> to vector<16x32xf32>
    %5 = vector.extract_strided_slice %3 {offsets = [16, 0], sizes = [16, 32], strides = [1, 1]} : vector<64x32xf32> to vector<16x32xf32>
    %6 = vector.extract_strided_slice %3 {offsets = [32, 0], sizes = [16, 32], strides = [1, 1]} : vector<64x32xf32> to vector<16x32xf32>
    %7 = vector.extract_strided_slice %3 {offsets = [48, 0], sizes = [16, 32], strides = [1, 1]} : vector<64x32xf32> to vector<16x32xf32>
    %8 = tpu.concatenate %4, %5, %6, %7 in 1 : vector<16x32xf32>, vector<16x32xf32>, vector<16x32xf32>, vector<16x32xf32> -> vector<16x128xf32>
    %c0_4 = arith.constant 0 : index
    %c0_5 = arith.constant 0 : index
    %9 = vector.load %arg1[%c0_4, %c0_5] : memref<32x16xf32, #tpu.memory_space<vmem>>, vector<32x16xf32>
    %cst_6 = arith.constant dense<0.000000e+00> : vector<32x128xf32>
    %10 = tpu.matmul %9, %8, %cst_6 {dimension_numbers = #tpu.dot_dimension_numbers<[1], [0], [0], [1], [0, 0, 1, 1], [], []>} : vector<32x16xf32>, vector<16x128xf32>, vector<32x128xf32> -> vector<32x128xf32>
    %11 = vector.extract_strided_slice %10 {offsets = [0, 0], sizes = [32, 32], strides = [1, 1]} : vector<32x128xf32> to vector<32x32xf32>
    %c0_7 = arith.constant 0 : index
    %c0_8 = arith.constant 0 : index
    %c0_9 = arith.constant 0 : index
    %12 = vector.load %arg4[%c0_7, %c0_8, %c0_9] : memref<4x32x32xf32, #tpu.memory_space<vmem>>, vector<1x32x32xf32>
    %13 = vector.shape_cast %12 : vector<1x32x32xf32> to vector<32x32xf32>
    %14 = vector.shape_cast %11 : vector<32x32xf32> to vector<1x32x32xf32>
    tpu.vector_store %arg4[%c0_7, %c0_8, %c0_9], %14 {strides = array<i32>} : memref<4x32x32xf32, #tpu.memory_space<vmem>>, vector<1x32x32xf32>,
    %15 = vector.extract_strided_slice %10 {offsets = [0, 32], sizes = [32, 32], strides = [1, 1]} : vector<32x128xf32> to vector<32x32xf32>
    %c1 = arith.constant 1 : index
    %c0_10 = arith.constant 0 : index
    %c0_11 = arith.constant 0 : index
    %16 = vector.load %arg4[%c1, %c0_10, %c0_11] : memref<4x32x32xf32, #tpu.memory_space<vmem>>, vector<1x32x32xf32>
    %17 = vector.shape_cast %16 : vector<1x32x32xf32> to vector<32x32xf32>
    %18 = vector.shape_cast %15 : vector<32x32xf32> to vector<1x32x32xf32>
    tpu.vector_store %arg4[%c1, %c0_10, %c0_11], %18 {strides = array<i32>} : memref<4x32x32xf32, #tpu.memory_space<vmem>>, vector<1x32x32xf32>,
    %19 = vector.extract_strided_slice %10 {offsets = [0, 64], sizes = [32, 32], strides = [1, 1]} : vector<32x128xf32> to vector<32x32xf32>
    %c2 = arith.constant 2 : index
    %c0_12 = arith.constant 0 : index
    %c0_13 = arith.constant 0 : index
    %20 = vector.load %arg4[%c2, %c0_12, %c0_13] : memref<4x32x32xf32, #tpu.memory_space<vmem>>, vector<1x32x32xf32>
    %21 = vector.shape_cast %20 : vector<1x32x32xf32> to vector<32x32xf32>
    %22 = vector.shape_cast %19 : vector<32x32xf32> to vector<1x32x32xf32>
    tpu.vector_store %arg4[%c2, %c0_12, %c0_13], %22 {strides = array<i32>} : memref<4x32x32xf32, #tpu.memory_space<vmem>>, vector<1x32x32xf32>,
    %23 = vector.extract_strided_slice %10 {offsets = [0, 96], sizes = [32, 32], strides = [1, 1]} : vector<32x128xf32> to vector<32x32xf32>
    %c3 = arith.constant 3 : index
    %c0_14 = arith.constant 0 : index
    %c0_15 = arith.constant 0 : index
    %24 = vector.load %arg4[%c3, %c0_14, %c0_15] : memref<4x32x32xf32, #tpu.memory_space<vmem>>, vector<1x32x32xf32>
    %25 = vector.shape_cast %24 : vector<1x32x32xf32> to vector<32x32xf32>
    %26 = vector.shape_cast %23 : vector<32x32xf32> to vector<1x32x32xf32>
    tpu.vector_store %arg4[%c3, %c0_14, %c0_15], %26 {strides = array<i32>} : memref<4x32x32xf32, #tpu.memory_space<vmem>>, vector<1x32x32xf32>,
    return
  }
  func.func @transform_0(%arg0: i32) -> (i32, i32) {
    %c0_i32 = arith.constant 0 : i32
    %c0_i32_0 = arith.constant 0 : i32
    %c0_i32_1 = arith.constant 0 : i32
    return %c0_i32, %c0_i32_0 : i32, i32
  }
  func.func @transform_1(%arg0: i32) -> (i32, i32) {
    %c0_i32 = arith.constant 0 : i32
    %c0_i32_0 = arith.constant 0 : i32
    %c0_i32_1 = arith.constant 0 : i32
    return %c0_i32, %c0_i32_0 : i32, i32
  }
  func.func @transform_2(%arg0: i32) -> (i32, i32, i32) {
    %c0_i32 = arith.constant 0 : i32
    %c0_i32_0 = arith.constant 0 : i32
    %c0_i32_1 = arith.constant 0 : i32
    return %arg0, %c0_i32, %c0_i32_0 : i32, i32, i32
  }
  func.func @transform_3(%arg0: i32) -> (i32, i32, i32) {
    %c0_i32 = arith.constant 0 : i32
    %c0_i32_0 = arith.constant 0 : i32
    %c0_i32_1 = arith.constant 0 : i32
    return %arg0, %c0_i32, %c0_i32_0 : i32, i32, i32
  }
}

</mosaic_0001>

<llo_original>
// kernel: tpu_custom_call.1
$region0: #{tpu_custom_call.1}
  #allocation0 [shape = 'u32[]', space=smem, size = 0x4, offset = 0x4, fixed_abs, tag = 'smem constant byte address 0x4 - core index']
  #allocation1 [shape = 'u32[144,128]{1,0:T(1,128)}', space=vmem, size = 0x12000, scoped, tag = 'internal scratch']
  %s0 = inlined_call_operand.vmem [shape: f32[32,16], index: 0, kind: input, shape index: {}]
  %s1 = inlined_call_operand.vmem [shape: f32[16,32], index: 1, kind: input, shape index: {}]
  %s2 = inlined_call_operand.vmem [shape: f32[2,64,16], index: 2, kind: input, shape index: {}]
  %s3 = inlined_call_operand.hbm [shape: f32[8,32,32], index: 3, kind: output, shape index: {}]
  %s4 = sld [smem:[#allocation0]]
  $region45: #{tpu_custom_call.1} parent=0
    _
  %s6 = ssub.s32 1, %s4
  %s7 = scalar_select 0, %s6, %s4
  $region1: #{tpu_custom_call.1} parent=0
    #allocation2 [shape = 'u8[131072]{0}', space=vmem, size = 0x20000, scoped, tag = 'output window, operand 0']
    #allocation3 [shape = 's32[2]{0}', space=sflag, size = 0x8, scoped, tag = 'scoped memory for tpu_custom_call.1']
    %8 = vsyncpa [#allocation3], 0
    %s9 = scalar_lea.sflag [#allocation3], 1
    %10 = vsyncpa %s9, 0
    loop: start=0, step=1, limit=4
    $region2: #{tpu_custom_call.1} parent=1 // loop_pre_header
      _
    $region3: #{tpu_custom_call.1} parent=1 // loop_header
      %s12 = sphi 0, %s16
      %p13 = scmp.ge.s32.totalorder %s12, 4
      %s20 = sphi 0, %s20
      %s22 = sphi 0, %s20
      %s23 = sphi 0, %s22
      %s37 = sphi 0, %s23
      %s41 = sphi 0, %s41
      %s43 = sphi 0, %s41
      %s44 = sphi 0, %s43
      %s58 = sphi 0, %s44
      %s64 = sphi 0, %s66
      %s67 = sphi 0, %s64
      %s68 = sphi 0, %s67
      %s84 = sphi 0, %s68
      %s90 = sphi 0, %s92
      %s93 = sphi 0, %s90
      %s94 = sphi 0, %s93
      %s110 = sphi 0, %s94
    $region4: #{tpu_custom_call.1} parent=1 // loop_header_branch
      %15 = sbr.rel (%p13) target = $region8
    $region5: #{tpu_custom_call.1} parent=1 // loop_body
      %s17 = ssub.s32 %s12, 1
      %s18 = ssub.s32 %s12, 2
      %s19 = sadd.s32 %s12, 1
      %s21 = sadd.s32 %s20, 1
      %p24 = scmp.eq.s32.totalorder %s12, 1
      %p25 = scmp.ne.s32.totalorder %s20, %s22
      %p26 = scmp.eq.s32.totalorder %s12, 0
      %p27 = por %p25, %p26
      %p28 = scmp.ne.s32.totalorder %s20, %s22
      %p29 = scmp.eq.s32.totalorder %s17, 1
      %p30 = por %p28, %p29
      %p31 = scmp.ne.s32.totalorder %s22, %s23
      %p32 = scmp.eq.s32.totalorder %s17, 0
      %p33 = por %p31, %p32
      %p34 = scmp.ne.s32.totalorder %s22, %s23
      %p35 = scmp.eq.s32.totalorder %s18, 1
      %p36 = por %p34, %p35
      %p38 = scmp.ne.s32.totalorder %s23, %s37
      %p39 = scmp.eq.s32.totalorder %s18, 0
      %p40 = por %p38, %p39
      %s42 = sadd.s32 %s41, 1
      %p45 = scmp.eq.s32.totalorder %s12, 1
      %p46 = scmp.ne.s32.totalorder %s41, %s43
      %p47 = scmp.eq.s32.totalorder %s12, 0
      %p48 = por %p46, %p47
      %p49 = scmp.ne.s32.totalorder %s41, %s43
      %p50 = scmp.eq.s32.totalorder %s17, 1
      %p51 = por %p49, %p50
      %p52 = scmp.ne.s32.totalorder %s43, %s44
      %p53 = scmp.eq.s32.totalorder %s17, 0
      %p54 = por %p52, %p53
      %p55 = scmp.ne.s32.totalorder %s43, %s44
      %p56 = scmp.eq.s32.totalorder %s18, 1
      %p57 = por %p55, %p56
      %p59 = scmp.ne.s32.totalorder %s44, %s58
      %p60 = scmp.eq.s32.totalorder %s18, 0
      %p61 = por %p59, %p60
      %s62 = ssub.s32 %s12, %s19
      %p63 = scmp.eq.s32.totalorder %s62, 0
      %s65 = sadd.s32 %s64, 1
      %s66 = scalar_select %p63, %s64, %s65
      %p69 = pneg %p63
      %p70 = scmp.eq.s32.totalorder %s12, 1
      %p71 = por %p69, %p70
      %p72 = scmp.ne.s32.totalorder %s64, %s67
      %p73 = scmp.eq.s32.totalorder %s12, 0
      %p74 = por %p72, %p73
      %p75 = scmp.ne.s32.totalorder %s64, %s67
      %p76 = scmp.eq.s32.totalorder %s17, 1
      %p77 = por %p75, %p76
      %p78 = scmp.ne.s32.totalorder %s67, %s68
      %p79 = scmp.eq.s32.totalorder %s17, 0
      %p80 = por %p78, %p79
      %p81 = scmp.ne.s32.totalorder %s67, %s68
      %p82 = scmp.eq.s32.totalorder %s18, 1
      %p83 = por %p81, %p82
      %p85 = scmp.ne.s32.totalorder %s68, %s84
      %p86 = scmp.eq.s32.totalorder %s18, 0
      %p87 = por %p85, %p86
      %s88 = ssub.s32 %s12, %s19
      %p89 = scmp.eq.s32.totalorder %s88, 0
      %s91 = sadd.s32 %s90, 1
      %s92 = scalar_select %p89, %s90, %s91
      %p95 = pneg %p89
      %p96 = scmp.eq.s32.totalorder %s12, 1
      %p97 = por %p95, %p96
      %p98 = scmp.ne.s32.totalorder %s90, %s93
      %p99 = scmp.eq.s32.totalorder %s12, 0
      %p100 = por %p98, %p99
      %p101 = scmp.ne.s32.totalorder %s90, %s93
      %p102 = scmp.eq.s32.totalorder %s17, 1
      %p103 = por %p101, %p102
      %p104 = scmp.ne.s32.totalorder %s93, %s94
      %p105 = scmp.eq.s32.totalorder %s17, 0
      %p106 = por %p104, %p105
      %p107 = scmp.ne.s32.totalorder %s93, %s94
      %p108 = scmp.eq.s32.totalorder %s18, 1
      %p109 = por %p107, %p108
      %p111 = scmp.ne.s32.totalorder %s94, %s110
      %p112 = scmp.eq.s32.totalorder %s18, 0
      %p113 = por %p111, %p112
      %p114 = scmp.le.s32.totalorder 1, %s12
      %p115 = scmp.lt.s32.totalorder %s12, 3
      %p116 = pnand %p114, %p115
      %p117 = pneg %p116
      // Predicated region
      $region9: #{tpu_custom_call.1} parent=5 // pred_check
        _
      $region10: #{tpu_custom_call.1} parent=5 // pred_check_branch
        %119 = sbr.rel (%p116) target = $region12
      $region11: #{tpu_custom_call.1} parent=5 // pred_region
        %s120 = ssub.s32 %s12, 1
        // Predicated region
        $region13: #{tpu_custom_call.1} parent=11 // pred_check
          %p121 = pneg %p33
        $region14: #{tpu_custom_call.1} parent=11 // pred_check_branch
          %123 = sbr.rel (%p121) target = $region16
        $region15: #{tpu_custom_call.1} parent=11 // pred_region
          _
        $region16: #{tpu_custom_call.1} parent=11 // pred_fallthru
          _
        // Predicated region
        $region17: #{tpu_custom_call.1} parent=11 // pred_check
          %p124 = pneg %p54
        $region18: #{tpu_custom_call.1} parent=11 // pred_check_branch
          %126 = sbr.rel (%p124) target = $region20
        $region19: #{tpu_custom_call.1} parent=11 // pred_region
          _
        $region20: #{tpu_custom_call.1} parent=11 // pred_fallthru
          _
      $region12: #{tpu_custom_call.1} parent=5 // pred_fallthru
        _
      %p127 = scmp.lt.s32.totalorder %s12, 2
      // Predicated region
      $region21: #{tpu_custom_call.1} parent=5 // pred_check
        %p128 = pneg %p127
      $region22: #{tpu_custom_call.1} parent=5 // pred_check_branch
        %130 = sbr.rel (%p128) target = $region24
      $region23: #{tpu_custom_call.1} parent=5 // pred_region
        // Predicated region
        $region25: #{tpu_custom_call.1} parent=23 // pred_check
          %p131 = pneg %p74
        $region26: #{tpu_custom_call.1} parent=23 // pred_check_branch
          %133 = sbr.rel (%p131) target = $region28
        $region27: #{tpu_custom_call.1} parent=23 // pred_region
          %p134 = scmp.lt.s32.totalorder %s12, 1
          %s135 = scalar_select %p134, %s12, 1
          %s136 = smul.addr %s135, 8
          %s137 = smul.addr %s136, 8
          %s138 = scalar_lea.vmem %s2, %s137
        $region28: #{tpu_custom_call.1} parent=23 // pred_fallthru
          _
      $region24: #{tpu_custom_call.1} parent=5 // pred_fallthru
        _
      %p139 = scmp.le.s32.totalorder 1, %s12
      %p140 = scmp.lt.s32.totalorder %s12, 3
      %p141 = pnand %p139, %p140
      %p142 = pneg %p141
      // Predicated region
      $region29: #{tpu_custom_call.1} parent=5 // pred_check
        _
      $region30: #{tpu_custom_call.1} parent=5 // pred_check_branch
        %144 = sbr.rel (%p141) target = $region32
      $region31: #{tpu_custom_call.1} parent=5 // pred_region
        %s145 = ssub.s32 %s12, 1
        %p146 = pneg %p33
        %p147 = pneg %p30
        %p148 = pneg %p54
        %p149 = pneg %p51
        %p150 = scmp.lt.s32.totalorder %s17, 1
        %s151 = scalar_select %p150, %s17, 1
        %s152 = smul.addr %s151, 8
        %s153 = smul.addr %s152, 8
        %s154 = scalar_lea.vmem %s2, %s153
        %p155 = pneg %p80
        %p156 = pneg %p77
        %p157 = pneg %p106
        %p158 = pneg %p103
        %s159 = sand.u32 %s93, 1
        %s160 = scalar_lea.sflag [#allocation3], %s159
        %s161 = sand.u32 %s93, 1
        %s162 = smul.addr %s161, 128
        %s163 = scalar_lea.vmem [#allocation2], %s162
        %p164 = scmp.lt.s32.totalorder %s17, 1
        %s165 = scalar_select %p164, %s17, 1
        %s166 = smul.addr %s165, 8
        %s167 = smul.addr %s166, 8
        %s168 = scalar_lea.vmem %s2, %s167
        %s169 = smul.u32 4, %s17
        %v170 = vld [vmem:[%s168] sm:$0xff]
        %v171 = vld [vmem:[%s168 + $0x8] sm:$0xff]
        %v172 = vld [vmem:[%s168 + $0x10] sm:$0xff]
        %v173 = vld [vmem:[%s168 + $0x18] sm:$0xff]
        %v174 = vld [vmem:[%s168 + $0x20] sm:$0xff]
        %v175 = vld [vmem:[%s168 + $0x28] sm:$0xff]
        %v176 = vld [vmem:[%s168 + $0x30] sm:$0xff]
        %v177 = vld [vmem:[%s168 + $0x38] sm:$0xff]
        %v178 = vld [vmem:[%s1] sm:$0xff]
        %v179 = vld [vmem:[%s1 + $0x8] sm:$0xff]
        %vm180 = vcmask 130048
        %v182 = vsel %vm180, %v170, 0
        %v185 = vsel %vm180, %v171, 0
        %v188 = vsel %vm180, %v172, 0
        %v191 = vsel %vm180, %v173, 0
        %v194 = vsel %vm180, %v174, 0
        %v197 = vsel %vm180, %v175, 0
        %v200 = vsel %vm180, %v176, 0
        %v203 = vsel %vm180, %v177, 0
        %205 = vmatprep.subr.mxu0 0.0
        %206 = vmatpush1.msra.mxu0 %v178
        %207 = vmatprep.subr.mxu0 0.0
        %208 = vmatpush1.msra.mxu0 %v179
        %209 = vmatprep.subr.mxu0 0.0
        %210 = vmatpush1.msra.mxu0 0.0
        %211 = vmatprep.subr.mxu0 0.0
        %212 = vmatpush1.msra.mxu0 0.0
        %213 = vmatprep.subr.mxu0 0.0
        %214 = vmatpush1.msra.mxu0 0.0
        %215 = vmatprep.subr.mxu0 0.0
        %216 = vmatpush1.msra.mxu0 0.0
        %217 = vmatprep.subr.mxu0 0.0
        %218 = vmatpush1.msra.mxu0 0.0
        %219 = vmatprep.subr.mxu0 0.0
        %220 = vmatpush1.msra.mxu0 0.0
        %221 = vmatprep.subr.mxu0 0.0
        %222 = vmatpush1.msra.mxu0 0.0
        %223 = vmatprep.subr.mxu0 0.0
        %224 = vmatpush1.msra.mxu0 0.0
        %225 = vmatprep.subr.mxu0 0.0
        %226 = vmatpush1.msra.mxu0 0.0
        %227 = vmatprep.subr.mxu0 0.0
        %228 = vmatpush1.msra.mxu0 0.0
        %229 = vmatprep.subr.mxu0 0.0
        %230 = vmatpush1.msra.mxu0 0.0
        %231 = vmatprep.subr.mxu0 0.0
        %232 = vmatpush1.msra.mxu0 0.0
        %233 = vmatprep.subr.mxu0 0.0
        %234 = vmatpush1.msra.mxu0 0.0
        %235 = vmatprep.subr.mxu0 0.0
        %236 = vmatpush1.msra.mxu0 0.0
        %237 = vmatprep.subr.mxu0 0.0
        %238 = vmatpush1.msra.mxu0 0.0
        %239 = vmatprep.subr.mxu0 0.0
        %240 = vmatpush1.msra.mxu0 0.0
        %241 = vmatprep.subr.mxu0 0.0
        %242 = vmatpush1.msra.mxu0 0.0
        %243 = vmatprep.subr.mxu0 0.0
        %244 = vmatpush1.msra.mxu0 0.0
        %245 = vmatprep.subr.mxu0 0.0
        %246 = vmatpush1.msra.mxu0 0.0
        %247 = vmatprep.subr.mxu0 0.0
        %248 = vmatpush1.msra.mxu0 0.0
        %249 = vmatprep.subr.mxu0 0.0
        %250 = vmatpush1.msra.mxu0 0.0
        %251 = vmatprep.subr.mxu0 0.0
        %252 = vmatpush1.msra.mxu0 0.0
        %253 = vmatprep.subr.mxu0 0.0
        %254 = vmatpush1.msra.mxu0 0.0
        %255 = vmatprep.subr.mxu0 0.0
        %256 = vmatpush1.msra.mxu0 0.0
        %257 = vmatprep.subr.mxu0 0.0
        %258 = vmatpush1.msra.mxu0 0.0
        %259 = vmatprep.subr.mxu0 0.0
        %260 = vmatpush1.msra.mxu0 0.0
        %261 = vmatprep.subr.mxu0 0.0
        %262 = vmatpush1.msra.mxu0 0.0
        %263 = vmatprep.subr.mxu0 0.0
        %264 = vmatpush1.msra.mxu0 0.0
        %265 = vmatprep.subr.mxu0 0.0
        %266 = vmatpush1.msra.mxu0 0.0
        %267 = vmatprep.subr.mxu0 0.0
        %268 = vmatpush1.msra.mxu0 0.0
        %269 = vmatprep.mubr.f32.mxu0 0.0
        %270 = vmatmul.mubr.f32.gmra.mrb[0].mxu0 %v182
        %v271 = vpop.f32.mrb[0].mxu0
        %v272 = vadd.f32 0.0, %v271
        %v273 = vpop.f32.mrb[0].mxu0
        %274 = vmatprep.mubr.f32.mxu0 0.0
        %275 = vmatmul.mubr.f32.gmra.mrb[0].mxu0 %v185
        %v276 = vpop.f32.mrb[0].mxu0
        %v277 = vadd.f32 0.0, %v276
        %v278 = vpop.f32.mrb[0].mxu0
        %279 = vmatprep.mubr.f32.mxu0 0.0
        %280 = vmatmul.mubr.f32.gmra.mrb[0].mxu0 %v188
        %v281 = vpop.f32.mrb[0].mxu0
        %v282 = vadd.f32 0.0, %v281
        %v283 = vpop.f32.mrb[0].mxu0
        %284 = vmatprep.mubr.f32.mxu0 0.0
        %285 = vmatmul.mubr.f32.gmra.mrb[0].mxu0 %v191
        %v286 = vpop.f32.mrb[0].mxu0
        %v287 = vadd.f32 0.0, %v286
        %v288 = vpop.f32.mrb[0].mxu0
        %289 = vmatprep.mubr.f32.mxu0 0.0
        %290 = vmatmul.mubr.f32.gmra.mrb[0].mxu0 %v194
        %v291 = vpop.f32.mrb[0].mxu0
        %v292 = vadd.f32 0.0, %v291
        %v293 = vpop.f32.mrb[0].mxu0
        %294 = vmatprep.mubr.f32.mxu0 0.0
        %295 = vmatmul.mubr.f32.gmra.mrb[0].mxu0 %v197
        %v296 = vpop.f32.mrb[0].mxu0
        %v297 = vadd.f32 0.0, %v296
        %v298 = vpop.f32.mrb[0].mxu0
        %299 = vmatprep.mubr.f32.mxu0 0.0
        %300 = vmatmul.mubr.f32.gmra.mrb[0].mxu0 %v200
        %v301 = vpop.f32.mrb[0].mxu0
        %v302 = vadd.f32 0.0, %v301
        %v303 = vpop.f32.mrb[0].mxu0
        %304 = vmatprep.mubr.f32.mxu0 0.0
        %305 = vmatmul.mubr.f32.gmra.mrb[0].mxu0 %v203
        %v306 = vpop.f32.mrb[0].mxu0
        %v307 = vadd.f32 0.0, %v306
        %v308 = vpop.f32.mrb[0].mxu0
        %309 = vdwg.mxu0
        %312 = vrot.lane.b32.xlu0 %v282, 32
        %v313 = vpop.permute.xlu0 %312
        %314 = vrot.lane.b32.xlu0 %v287, 32
        %v315 = vpop.permute.xlu0 %314
        %320 = vrot.lane.b32.xlu0 %v292, 64
        %v321 = vpop.permute.xlu0 %320
        %322 = vrot.lane.b32.xlu0 %v297, 64
        %v323 = vpop.permute.xlu0 %322
        %328 = vrot.lane.b32.xlu0 %v302, 96
        %v329 = vpop.permute.xlu0 %328
        %330 = vrot.lane.b32.xlu0 %v307, 96
        %v331 = vpop.permute.xlu0 %330
        %vm334 = vcmask 261120
        %v335 = vsel %vm334, %v272, %v313
        %v336 = vsel %vm334, %v277, %v315
        %vm337 = vcmask 523264
        %v338 = vsel %vm337, %v335, %v321
        %v339 = vsel %vm337, %v336, %v323
        %vm340 = vcmask 785408
        %v341 = vsel %vm340, %v338, %v329
        %v342 = vsel %vm340, %v339, %v331
        %v343 = vld [vmem:[%s0] sm:$0xff]
        %v344 = vld [vmem:[%s0 + $0x8] sm:$0xff]
        %v345 = vld [vmem:[%s0 + $0x10] sm:$0xff]
        %v346 = vld [vmem:[%s0 + $0x18] sm:$0xff]
        %v348 = vsel %vm180, %v343, 0
        %v351 = vsel %vm180, %v344, 0
        %v354 = vsel %vm180, %v345, 0
        %v357 = vsel %vm180, %v346, 0
        %359 = vmatprep.subr.mxu0 0.0
        %360 = vmatpush1.msra.mxu0 %v341
        %361 = vmatprep.subr.mxu0 0.0
        %362 = vmatpush1.msra.mxu0 %v342
        %363 = vmatprep.subr.mxu0 0.0
        %364 = vmatpush1.msra.mxu0 0.0
        %365 = vmatprep.subr.mxu0 0.0
        %366 = vmatpush1.msra.mxu0 0.0
        %367 = vmatprep.subr.mxu0 0.0
        %368 = vmatpush1.msra.mxu0 0.0
        %369 = vmatprep.subr.mxu0 0.0
        %370 = vmatpush1.msra.mxu0 0.0
        %371 = vmatprep.subr.mxu0 0.0
        %372 = vmatpush1.msra.mxu0 0.0
        %373 = vmatprep.subr.mxu0 0.0
        %374 = vmatpush1.msra.mxu0 0.0
        %375 = vmatprep.subr.mxu0 0.0
        %376 = vmatpush1.msra.mxu0 0.0
        %377 = vmatprep.subr.mxu0 0.0
        %378 = vmatpush1.msra.mxu0 0.0
        %379 = vmatprep.subr.mxu0 0.0
        %380 = vmatpush1.msra.mxu0 0.0
        %381 = vmatprep.subr.mxu0 0.0
        %382 = vmatpush1.msra.mxu0 0.0
        %383 = vmatprep.subr.mxu0 0.0
        %384 = vmatpush1.msra.mxu0 0.0
        %385 = vmatprep.subr.mxu0 0.0
        %386 = vmatpush1.msra.mxu0 0.0
        %387 = vmatprep.subr.mxu0 0.0
        %388 = vmatpush1.msra.mxu0 0.0
        %389 = vmatprep.subr.mxu0 0.0
        %390 = vmatpush1.msra.mxu0 0.0
        %391 = vmatprep.subr.mxu0 0.0
        %392 = vmatpush1.msra.mxu0 0.0
        %393 = vmatprep.subr.mxu0 0.0
        %394 = vmatpush1.msra.mxu0 0.0
        %395 = vmatprep.subr.mxu0 0.0
        %396 = vmatpush1.msra.mxu0 0.0
        %397 = vmatprep.subr.mxu0 0.0
        %398 = vmatpush1.msra.mxu0 0.0
        %399 = vmatprep.subr.mxu0 0.0
        %400 = vmatpush1.msra.mxu0 0.0
        %401 = vmatprep.subr.mxu0 0.0
        %402 = vmatpush1.msra.mxu0 0.0
        %403 = vmatprep.subr.mxu0 0.0
        %404 = vmatpush1.msra.mxu0 0.0
        %405 = vmatprep.subr.mxu0 0.0
        %406 = vmatpush1.msra.mxu0 0.0
        %407 = vmatprep.subr.mxu0 0.0
        %408 = vmatpush1.msra.mxu0 0.0
        %409 = vmatprep.subr.mxu0 0.0
        %410 = vmatpush1.msra.mxu0 0.0
        %411 = vmatprep.subr.mxu0 0.0
        %412 = vmatpush1.msra.mxu0 0.0
        %413 = vmatprep.subr.mxu0 0.0
        %414 = vmatpush1.msra.mxu0 0.0
        %415 = vmatprep.subr.mxu0 0.0
        %416 = vmatpush1.msra.mxu0 0.0
        %417 = vmatprep.subr.mxu0 0.0
        %418 = vmatpush1.msra.mxu0 0.0
        %419 = vmatprep.subr.mxu0 0.0
        %420 = vmatpush1.msra.mxu0 0.0
        %421 = vmatprep.subr.mxu0 0.0
        %422 = vmatpush1.msra.mxu0 0.0
        %423 = vmatprep.mubr.f32.mxu0 0.0
        %424 = vmatmul.mubr.f32.gmra.mrb[0].mxu0 %v348
        %v425 = vpop.f32.mrb[0].mxu0
        %v426 = vadd.f32 0.0, %v425
        %v427 = vpop.f32.mrb[0].mxu0
        %428 = vmatprep.mubr.f32.mxu0 0.0
        %429 = vmatmul.mubr.f32.gmra.mrb[0].mxu0 %v351
        %v430 = vpop.f32.mrb[0].mxu0
        %v431 = vadd.f32 0.0, %v430
        %v432 = vpop.f32.mrb[0].mxu0
        %433 = vmatprep.mubr.f32.mxu0 0.0
        %434 = vmatmul.mubr.f32.gmra.mrb[0].mxu0 %v354
        %v435 = vpop.f32.mrb[0].mxu0
        %v436 = vadd.f32 0.0, %v435
        %v437 = vpop.f32.mrb[0].mxu0
        %438 = vmatprep.mubr.f32.mxu0 0.0
        %439 = vmatmul.mubr.f32.gmra.mrb[0].mxu0 %v357
        %v440 = vpop.f32.mrb[0].mxu0
        %v441 = vadd.f32 0.0, %v440
        %v442 = vpop.f32.mrb[0].mxu0
        %443 = vdwg.mxu0
        %444 = vst.msk [vmem:[%s163] sm:$0xff] %vm334, %v426
        %445 = vst.msk [vmem:[%s163 + $0x8] sm:$0xff] %vm334, %v431
        %446 = vst.msk [vmem:[%s163 + $0x10] sm:$0xff] %vm334, %v436
        %447 = vst.msk [vmem:[%s163 + $0x18] sm:$0xff] %vm334, %v441
        %452 = vrot.lane.b32.xlu0 %v426, 96
        %v453 = vpop.permute.xlu0 %452
        %454 = vrot.lane.b32.xlu0 %v431, 96
        %v455 = vpop.permute.xlu0 %454
        %456 = vrot.lane.b32.xlu0 %v436, 96
        %v457 = vpop.permute.xlu0 %456
        %458 = vrot.lane.b32.xlu0 %v441, 96
        %v459 = vpop.permute.xlu0 %458
        %s464 = scalar_lea.vmem %s163, 32 [#allocation2]
        %465 = vst.msk [vmem:[%s464] sm:$0xff] %vm334, %v453
        %466 = vst.msk [vmem:[%s464 + $0x8] sm:$0xff] %vm334, %v455
        %467 = vst.msk [vmem:[%s464 + $0x10] sm:$0xff] %vm334, %v457
        %468 = vst.msk [vmem:[%s464 + $0x18] sm:$0xff] %vm334, %v459
        %469 = vrot.lane.b32.xlu0 %v426, 64
        %v470 = vpop.permute.xlu0 %469
        %471 = vrot.lane.b32.xlu0 %v431, 64
        %v472 = vpop.permute.xlu0 %471
        %473 = vrot.lane.b32.xlu0 %v436, 64
        %v474 = vpop.permute.xlu0 %473
        %475 = vrot.lane.b32.xlu0 %v441, 64
        %v476 = vpop.permute.xlu0 %475
        %s481 = scalar_lea.vmem %s163, 64 [#allocation2]
        %482 = vst.msk [vmem:[%s481] sm:$0xff] %vm334, %v470
        %483 = vst.msk [vmem:[%s481 + $0x8] sm:$0xff] %vm334, %v472
        %484 = vst.msk [vmem:[%s481 + $0x10] sm:$0xff] %vm334, %v474
        %485 = vst.msk [vmem:[%s481 + $0x18] sm:$0xff] %vm334, %v476
        %486 = vrot.lane.b32.xlu0 %v426, 32
        %v487 = vpop.permute.xlu0 %486
        %488 = vrot.lane.b32.xlu0 %v431, 32
        %v489 = vpop.permute.xlu0 %488
        %490 = vrot.lane.b32.xlu0 %v436, 32
        %v491 = vpop.permute.xlu0 %490
        %492 = vrot.lane.b32.xlu0 %v441, 32
        %v493 = vpop.permute.xlu0 %492
        %s498 = scalar_lea.vmem %s163, 96 [#allocation2]
        %499 = vst.msk [vmem:[%s498] sm:$0xff] %vm334, %v487
        %500 = vst.msk [vmem:[%s498 + $0x8] sm:$0xff] %vm334, %v489
        %501 = vst.msk [vmem:[%s498 + $0x10] sm:$0xff] %vm334, %v491
        %502 = vst.msk [vmem:[%s498 + $0x18] sm:$0xff] %vm334, %v493
        %s503 = sand.u32 %s93, 1
        %s504 = scalar_lea.sflag [#allocation3], %s503
        %s505 = sand.u32 %s93, 1
        %s506 = smul.addr %s505, 128
        %s507 = scalar_lea.vmem [#allocation2], %s506
        // Predicated region
        $region33: #{tpu_custom_call.1} parent=31 // pred_check
          %p508 = pneg %p103
        $region34: #{tpu_custom_call.1} parent=31 // pred_check_branch
          %510 = sbr.rel (%p508) target = $region36
        $region35: #{tpu_custom_call.1} parent=31 // pred_region
          %s511 = smul.u32 4, %s17
          %s513 = ssub.s32 2048, 2048
          %514 = vsyncadd %s504, %s513
          %s515 = smul.addr %s511, 4
          %s516 = smul.addr %s515, 128
          %s517 = scalar_lea.hbm %s3, %s516
          %s518 = sshll.u32 %s507, 4
          %s519 = int_to_ptr.vmem [resolvable:$true] %s518
          %524 = dma.vmem_to_hbm [thread:$0]  %s519, 2048, %s517, %s504, 128, 128, 8
        $region36: #{tpu_custom_call.1} parent=31 // pred_fallthru
          _
      $region32: #{tpu_custom_call.1} parent=5 // pred_fallthru
        _
      %p525 = scmp.le.s32.totalorder 2, %s12
      // Predicated region
      $region37: #{tpu_custom_call.1} parent=5 // pred_check
        %p526 = pneg %p525
      $region38: #{tpu_custom_call.1} parent=5 // pred_check_branch
        %528 = sbr.rel (%p526) target = $region40
      $region39: #{tpu_custom_call.1} parent=5 // pred_region
        %s529 = ssub.s32 %s12, 2
        // Predicated region
        $region41: #{tpu_custom_call.1} parent=39 // pred_check
          %p530 = pneg %p109
        $region42: #{tpu_custom_call.1} parent=39 // pred_check_branch
          %532 = sbr.rel (%p530) target = $region44
        $region43: #{tpu_custom_call.1} parent=39 // pred_region
          %s533 = sand.u32 %s94, 1
          %s534 = scalar_lea.sflag [#allocation3], %s533
          %s535 = sand.u32 %s94, 1
          %s536 = smul.addr %s535, 128
          %s537 = scalar_lea.vmem [#allocation2], %s536
          %538 = dma.done %s534, 2048
        $region44: #{tpu_custom_call.1} parent=39 // pred_fallthru
          _
      $region40: #{tpu_custom_call.1} parent=5 // pred_fallthru
        _
    $region6: #{tpu_custom_call.1} parent=1 // loop_footer
      %s16 = sadd.s32 1, %s12
    $region7: #{tpu_custom_call.1} parent=1 // loop_footer_branch
      %11 = sbr.rel target = $region3
    $region8: #{tpu_custom_call.1} parent=1 // loop_exit
      _
    %539 = vsyncpa [#allocation3], 1
    %s540 = scalar_lea.sflag [#allocation3], 1
    %541 = vsyncpa %s540, 1

</llo_original>
